<compile_context>
chip_gen: v6e
topology: v6e:2x2x1
jax: 0.10.0
libtpu: 0.0.40
codegen_flags: <defaults>
</compile_context>

<pallas_src>
import functools

import jax
import jax.numpy as jnp
import numpy as np
from jax import lax
from jax.experimental import pallas as pl
from jax.experimental.pallas import tpu as pltpu


def _round_up(x, m):
    return (x + m - 1) // m * m


# ---------------------------------------------------------------------------
# Fused Pallas kernel
# ---------------------------------------------------------------------------
def sparse_transe_kernel(reg_len_ref, x_ref, reg_ref, o_ref, reg_sc, *, gamma, alpha):
    # ---- Sparse regularizer: computed ONCE (grid step 0), cached in VMEM scratch.
    #      sum_s ||Xn_s @ Xn_s^T||_F via the (D, D) Gram of each reg set.
    @pl.when(pl.program_id(0) == 0)
    def _():
        n_pad = reg_ref.shape[1]
        row_ids = lax.broadcasted_iota(jnp.int32, (n_pad, 1), 0)
        total = jnp.zeros((1, 1), jnp.float32)
        for s in range(3):                                  # static unroll: 3 reg sets
            xs = reg_ref[s]                                 # (n_pad, D)
            valid = row_ids < reg_len_ref[s]                # (n_pad, 1) masks padding
            sqn = jnp.sum(xs * xs, axis=1, keepdims=True)   # (n_pad, 1)
            inv = jnp.where(valid, lax.rsqrt(sqn), 0.0)     # padded rows -> exactly 0
            xsn = xs * inv                                  # row-normalized, pad rows 0
            # (D, D) Gram: contract dim 0 with dim 0 (no materialized transpose).
            g = lax.dot_general(xsn, xsn, (((0,), (0,)), ((), ())),
                                preferred_element_type=jnp.float32)      # (D, D)
            gsq = jnp.sum(jnp.sum(g * g, axis=1, keepdims=True),
                          axis=0, keepdims=True)
            total = total + jnp.sqrt(gsq)                   # (1, 1)
        reg_sc[...] = total

    # ---- TransE score, transposed layout: (6, D, TB); D on sublanes, batch on lanes.
    x = x_ref[...]                                          # (6, D, TB)
    sq = jnp.sum(x * x, axis=1, keepdims=True)              # (6, 1, TB)
    xn = x * lax.rsqrt(sq)                                  # row-normalize (EUP rsqrt)
    h, t, r = xn[0], xn[1], xn[2]
    nh, nt, nr = xn[3], xn[4], xn[5]
    pos = jnp.sqrt(jnp.sum((h + r - t) ** 2, axis=0, keepdims=True))     # (1, TB)
    neg = jnp.sqrt(jnp.sum((nh + nr - nt) ** 2, axis=0, keepdims=True))  # (1, TB)

    # Lane-dense output block (1, TB); cached reg scalar broadcasts over lanes.
    o_ref[...] = (pos - neg) + (gamma + alpha * reg_sc[...])


# ---------------------------------------------------------------------------
# Wrapper: gathers + layout prep (XLA glue), single fused pallas_call
# ---------------------------------------------------------------------------
def sparse_transe_forward(params, head, tail, relation, n_head, n_tail,
                          n_relation, reg_user, reg_item, reg_brand,
                          gamma=1.0, alpha=1e-4, batch_block=1024):
    ent = params["entity_embed"]
    rel = params["relation_embed"]
    D = ent.shape[1]
    B = head.shape[0]

    # Embedding gathers, stacked into one slab and transposed to (6, D, B).
    # TODO(synk): for very large B, fold these gathers into the kernel via
    # scalar-prefetch (pl.Element) index maps so they ride the pipelined DMA.
    slabs = jnp.stack([ent[head], ent[tail], rel[relation],
                       ent[n_head], ent[n_tail], rel[n_relation]], axis=0)  # (6, B, D)
    x = jnp.transpose(slabs, (0, 2, 1)).astype(jnp.float32)                 # (6, D, B)

    # Batch tiling: lane-dense blocks (multiples of 128).
    batch_block = _round_up(int(batch_block), 128)
    tb = min(batch_block, _round_up(max(B, 1), 128))
    b_pad = _round_up(max(B, 1), tb)
    if b_pad != B:
        x = jnp.pad(x, ((0, 0), (0, 0), (0, b_pad - B)))

    # Reg sets: zero-pad each to a common multiple-of-8 row count, stack.
    sets = (reg_user, reg_item, reg_brand)
    lens = [int(s.shape[0]) for s in sets]
    n_pad = _round_up(max(lens + [1]), 8)
    rows = []
    for idx, length in zip(sets, lens):
        if length == 0:
            rows.append(jnp.zeros((n_pad, D), jnp.float32))
        else:
            r = ent[idx].astype(jnp.float32)
            rows.append(jnp.pad(r, ((0, n_pad - length), (0, 0))))
    reg_x = jnp.stack(rows, axis=0)                       # (3, n_pad, D)
    reg_len = jnp.asarray(lens, dtype=jnp.int32)          # (3,) -> SMEM scalar prefetch

    # Only raise the scoped-VMEM budget when the operands actually need it.
    est_bytes = (2 * 6 * D * tb + 2 * 3 * n_pad * D + 2 * tb) * 4
    cp_kwargs = dict(dimension_semantics=("arbitrary",))  # step-0 reg cache needs a
    if est_bytes > (24 << 20):                            # single sequential grid walk
        cp_kwargs["vmem_limit_bytes"] = int(min(est_bytes + (8 << 20), 100 << 20))
    # TODO(synk): chunk reg rows over a second grid axis if the reg slab ever
    # exceeds VMEM (not expected for typical SparseTransE reg-set sizes).

    grid = (b_pad // tb,)
    out = pl.pallas_call(
        functools.partial(sparse_transe_kernel,
                          gamma=float(gamma), alpha=float(alpha)),
        out_shape=jax.ShapeDtypeStruct((1, b_pad), jnp.float32),
        grid_spec=pltpu.PrefetchScalarGridSpec(
            num_scalar_prefetch=1,
            grid=grid,
            in_specs=[
                pl.BlockSpec((6, D, tb), lambda i, reg_len: (0, 0, i)),
                pl.BlockSpec((3, n_pad, D), lambda i, reg_len: (0, 0, 0)),
            ],
            out_specs=pl.BlockSpec((1, tb), lambda i, reg_len: (0, i)),
            scratch_shapes=[pltpu.VMEM((1, 1), jnp.float32)],   # cached reg scalar
        ),
        compiler_params=pltpu.CompilerParams(**cp_kwargs),
    )(reg_len, x, reg_x)

    return out[0, :B]                                     # (B,)


# ---------------------------------------------------------------------------
# Pure-JAX reference (matches the PyTorch module)
# ---------------------------------------------------------------------------
def _reference(params, head, tail, relation, n_head, n_tail, n_relation,
               reg_user, reg_item, reg_brand, gamma=1.0, alpha=1e-4):
    ent = params["entity_embed"]
    rel = params["relation_embed"]

    def rn(x):
        return x / jnp.linalg.norm(x, axis=1, keepdims=True)

    h, t, r = rn(ent[head]), rn(ent[tail]), rn(rel[relation])
    nh, nt, nr = rn(ent[n_head]), rn(ent[n_tail]), rn(rel[n_relation])
    score = (gamma + jnp.linalg.norm(h + r - t, axis=1)
             - jnp.linalg.norm(nh + nr - nt, axis=1))

    def reg_term(idx):
        if idx.shape[0] == 0:
            return jnp.float32(0.0)   # zeros(2,2) -> Frobenius norm 0
        xx = rn(ent[idx])
        return jnp.linalg.norm(xx @ xx.T)

    reg = reg_term(reg_user) + reg_term(reg_item) + reg_term(reg_brand)
    return score + alpha * reg


# ---------------------------------------------------------------------------
# Demo
# ---------------------------------------------------------------------------
if __name__ == "__main__":
    embedding_dim = 32
    entity_size = 50
    relation_size = 10
    batch = 8
    gamma, alpha = 1.0, 1e-4

    key = jax.random.PRNGKey(0)
    k_ent, k_rel, k_idx = jax.random.split(key, 3)

    # nn.Embedding default init: N(0, 1)
    params = {
        "entity_embed": jax.random.normal(k_ent, (entity_size, embedding_dim),
                                          dtype=jnp.float32),
        "relation_embed": jax.random.normal(k_rel, (relation_size, embedding_dim),
                                            dtype=jnp.float32),
    }

    ks = jax.random.split(k_idx, 9)
    head = jax.random.randint(ks[0], (batch,), 0, entity_size)
    tail = jax.random.randint(ks[1], (batch,), 0, entity_size)
    relation = jax.random.randint(ks[2], (batch,), 0, relation_size)
    n_head = jax.random.randint(ks[3], (batch,), 0, entity_size)
    n_tail = jax.random.randint(ks[4], (batch,), 0, entity_size)
    n_relation = jax.random.randint(ks[5], (batch,), 0, relation_size)
    reg_user = jax.random.randint(ks[6], (6,), 0, entity_size)
    reg_item = jax.random.randint(ks[7], (5,), 0, entity_size)
    reg_brand = jax.random.randint(ks[8], (4,), 0, entity_size)

    # 1) Baseline correctness.
    score = sparse_transe_forward(params, head, tail, relation, n_head, n_tail,
                                  n_relation, reg_user, reg_item, reg_brand,
                                  gamma=gamma, alpha=alpha)
    score = jax.block_until_ready(score)
    ref = _reference(params, head, tail, relation, n_head, n_tail, n_relation,
                     reg_user, reg_item, reg_brand, gamma=gamma, alpha=alpha)
    np.testing.assert_allclose(np.asarray(score), np.asarray(ref),
                               rtol=2e-5, atol=2e-5)

    # 2) Empty reg set -> reg contribution 0 (torch.zeros(2,2) branch).
    empty = jnp.zeros((0,), jnp.int32)
    score2 = jax.block_until_ready(
        sparse_transe_forward(params, head, tail, relation, n_head, n_tail,
                              n_relation, reg_user, empty, reg_brand,
                              gamma=gamma, alpha=alpha))
    ref2 = _reference(params, head, tail, relation, n_head, n_tail, n_relation,
                      reg_user, empty, reg_brand, gamma=gamma, alpha=alpha)
    np.testing.assert_allclose(np.asarray(score2), np.asarray(ref2),
                               rtol=2e-5, atol=2e-5)

    # 3) Multi-block grid (exercises the step-0 reg cache across grid steps).
    batch3 = 200
    ks3 = jax.random.split(jax.random.PRNGKey(7), 6)
    head3 = jax.random.randint(ks3[0], (batch3,), 0, entity_size)
    tail3 = jax.random.randint(ks3[1], (batch3,), 0, entity_size)
    rel3 = jax.random.randint(ks3[2], (batch3,), 0, relation_size)
    nh3 = jax.random.randint(ks3[3], (batch3,), 0, entity_size)
    nt3 = jax.random.randint(ks3[4], (batch3,), 0, entity_size)
    nr3 = jax.random.randint(ks3[5], (batch3,), 0, relation_size)
    score3 = jax.block_until_ready(
        sparse_transe_forward(params, head3, tail3, rel3, nh3, nt3, nr3,
                              reg_user, reg_item, reg_brand,
                              gamma=gamma, alpha=alpha, batch_block=128))
    ref3 = _reference(params, head3, tail3, rel3, nh3, nt3, nr3,
                      reg_user, reg_item, reg_brand, gamma=gamma, alpha=alpha)
    np.testing.assert_allclose(np.asarray(score3), np.asarray(ref3),
                               rtol=2e-5, atol=2e-5)

    print("KERNEL_OK")
</pallas_src>

<mosaic_0001>
module attributes {stable_mosaic.version = 11 : i64} {
  func.func @sparse_transe_kernel(%arg0: i32, %arg1: memref<3xi32, #tpu.memory_space<smem>>, %arg2: memref<6x32x128xf32, #tpu.memory_space<vmem>>, %arg3: memref<3x8x32xf32, #tpu.memory_space<vmem>>, %arg4: memref<1x128xf32, #tpu.memory_space<vmem>>, %arg5: memref<1x1xf32, #tpu.memory_space<vmem>>) attributes {dimension_semantics = [#tpu.dimension_semantics<arbitrary>], iteration_bounds = array<i64: 1>, scalar_prefetch = 1 : i64, scratch_operands = 1 : i64, tpu.core_type = #tpu.core_type<tc>, window_params = [{transform_indices = @transform_0, window_bounds = array<i64: 6, 32, 128>}, {pipeline_mode = #tpu.pipeline_mode<synchronous>, transform_indices = @transform_1, window_bounds = array<i64: 3, 8, 32>}, {transform_indices = @transform_2, window_bounds = array<i64: 1, 128>}]} {
    %c0_i32 = arith.constant 0 : i32
    %0 = arith.cmpi eq, %arg0, %c0_i32 : i32
    %1 = arith.extui %0 : i1 to i32
    %c0_i32_0 = arith.constant 0 : i32
    %2 = arith.cmpi ne, %1, %c0_i32_0 : i32
    scf.if %2 {
      %43 = tpu.iota {dimensions = array<i32: 0>} : vector<8x1xi32>
      %cst_11 = arith.constant 0.000000e+00 : f32
      %44 = vector.broadcast %cst_11 : f32 to vector<1x1xf32>
      %c0_12 = arith.constant 0 : index
      %c0_13 = arith.constant 0 : index
      %c0_14 = arith.constant 0 : index
      %45 = vector.load %arg3[%c0_12, %c0_13, %c0_14] : memref<3x8x32xf32, #tpu.memory_space<vmem>>, vector<1x8x32xf32>
      %46 = vector.shape_cast %45 : vector<1x8x32xf32> to vector<8x32xf32>
      %c0_15 = arith.constant 0 : index
      %47 = memref.load %arg1[%c0_15] : memref<3xi32, #tpu.memory_space<smem>>
      %48 = vector.broadcast %47 : i32 to vector<8x1xi32>
      %49 = arith.cmpi slt, %43, %48 : vector<8x1xi32>
      %50 = arith.mulf %46, %46 : vector<8x32xf32>
      %cst_16 = arith.constant dense<0.000000e+00> : vector<8xf32>
      %51 = vector.multi_reduction <add>, %50, %cst_16 [1] : vector<8x32xf32> to vector<8xf32>
      %52 = vector.shape_cast %51 : vector<8xf32> to vector<8x1xf32>
      %53 = math.rsqrt %52 : vector<8x1xf32>
      %cst_17 = arith.constant 0.000000e+00 : f32
      %54 = vector.broadcast %cst_17 : f32 to vector<8x1xf32>
      %55 = arith.select %49, %53, %54 : vector<8x1xi1>, vector<8x1xf32>
      %56 = vector.broadcast %55 : vector<8x1xf32> to vector<8x32xf32>
      %57 = arith.mulf %46, %56 : vector<8x32xf32>
      %cst_18 = arith.constant dense<0.000000e+00> : vector<32x32xf32>
      %58 = tpu.matmul %57, %57, %cst_18 {dimension_numbers = #tpu.dot_dimension_numbers<[0], [0], [1], [1], [0, 1, 1, 1], [], []>} : vector<8x32xf32>, vector<8x32xf32>, vector<32x32xf32> -> vector<32x32xf32>
      %59 = arith.mulf %58, %58 : vector<32x32xf32>
      %cst_19 = arith.constant dense<0.000000e+00> : vector<32xf32>
      %60 = vector.multi_reduction <add>, %59, %cst_19 [1] : vector<32x32xf32> to vector<32xf32>
      %61 = vector.shape_cast %60 : vector<32xf32> to vector<32x1xf32>
      %cst_20 = arith.constant dense<0.000000e+00> : vector<1xf32>
      %62 = vector.multi_reduction <add>, %61, %cst_20 [0] : vector<32x1xf32> to vector<1xf32>
      %63 = vector.shape_cast %62 : vector<1xf32> to vector<1x1xf32>
      %64 = math.sqrt %63 : vector<1x1xf32>
      %65 = arith.addf %44, %64 : vector<1x1xf32>
      %c1 = arith.constant 1 : index
      %c0_21 = arith.constant 0 : index
      %c0_22 = arith.constant 0 : index
      %66 = vector.load %arg3[%c1, %c0_21, %c0_22] : memref<3x8x32xf32, #tpu.memory_space<vmem>>, vector<1x8x32xf32>
      %67 = vector.shape_cast %66 : vector<1x8x32xf32> to vector<8x32xf32>
      %c1_23 = arith.constant 1 : index
      %68 = memref.load %arg1[%c1_23] : memref<3xi32, #tpu.memory_space<smem>>
      %69 = vector.broadcast %68 : i32 to vector<8x1xi32>
      %70 = arith.cmpi slt, %43, %69 : vector<8x1xi32>
      %71 = arith.mulf %67, %67 : vector<8x32xf32>
      %cst_24 = arith.constant dense<0.000000e+00> : vector<8xf32>
      %72 = vector.multi_reduction <add>, %71, %cst_24 [1] : vector<8x32xf32> to vector<8xf32>
      %73 = vector.shape_cast %72 : vector<8xf32> to vector<8x1xf32>
      %74 = math.rsqrt %73 : vector<8x1xf32>
      %cst_25 = arith.constant 0.000000e+00 : f32
      %75 = vector.broadcast %cst_25 : f32 to vector<8x1xf32>
      %76 = arith.select %70, %74, %75 : vector<8x1xi1>, vector<8x1xf32>
      %77 = vector.broadcast %76 : vector<8x1xf32> to vector<8x32xf32>
      %78 = arith.mulf %67, %77 : vector<8x32xf32>
      %cst_26 = arith.constant dense<0.000000e+00> : vector<32x32xf32>
      %79 = tpu.matmul %78, %78, %cst_26 {dimension_numbers = #tpu.dot_dimension_numbers<[0], [0], [1], [1], [0, 1, 1, 1], [], []>} : vector<8x32xf32>, vector<8x32xf32>, vector<32x32xf32> -> vector<32x32xf32>
      %80 = arith.mulf %79, %79 : vector<32x32xf32>
      %cst_27 = arith.constant dense<0.000000e+00> : vector<32xf32>
      %81 = vector.multi_reduction <add>, %80, %cst_27 [1] : vector<32x32xf32> to vector<32xf32>
      %82 = vector.shape_cast %81 : vector<32xf32> to vector<32x1xf32>
      %cst_28 = arith.constant dense<0.000000e+00> : vector<1xf32>
      %83 = vector.multi_reduction <add>, %82, %cst_28 [0] : vector<32x1xf32> to vector<1xf32>
      %84 = vector.shape_cast %83 : vector<1xf32> to vector<1x1xf32>
      %85 = math.sqrt %84 : vector<1x1xf32>
      %86 = arith.addf %65, %85 : vector<1x1xf32>
      %c2 = arith.constant 2 : index
      %c0_29 = arith.constant 0 : index
      %c0_30 = arith.constant 0 : index
      %87 = vector.load %arg3[%c2, %c0_29, %c0_30] : memref<3x8x32xf32, #tpu.memory_space<vmem>>, vector<1x8x32xf32>
      %88 = vector.shape_cast %87 : vector<1x8x32xf32> to vector<8x32xf32>
      %c2_31 = arith.constant 2 : index
      %89 = memref.load %arg1[%c2_31] : memref<3xi32, #tpu.memory_space<smem>>
      %90 = vector.broadcast %89 : i32 to vector<8x1xi32>
      %91 = arith.cmpi slt, %43, %90 : vector<8x1xi32>
      %92 = arith.mulf %88, %88 : vector<8x32xf32>
      %cst_32 = arith.constant dense<0.000000e+00> : vector<8xf32>
      %93 = vector.multi_reduction <add>, %92, %cst_32 [1] : vector<8x32xf32> to vector<8xf32>
      %94 = vector.shape_cast %93 : vector<8xf32> to vector<8x1xf32>
      %95 = math.rsqrt %94 : vector<8x1xf32>
      %cst_33 = arith.constant 0.000000e+00 : f32
      %96 = vector.broadcast %cst_33 : f32 to vector<8x1xf32>
      %97 = arith.select %91, %95, %96 : vector<8x1xi1>, vector<8x1xf32>
      %98 = vector.broadcast %97 : vector<8x1xf32> to vector<8x32xf32>
      %99 = arith.mulf %88, %98 : vector<8x32xf32>
      %cst_34 = arith.constant dense<0.000000e+00> : vector<32x32xf32>
      %100 = tpu.matmul %99, %99, %cst_34 {dimension_numbers = #tpu.dot_dimension_numbers<[0], [0], [1], [1], [0, 1, 1, 1], [], []>} : vector<8x32xf32>, vector<8x32xf32>, vector<32x32xf32> -> vector<32x32xf32>
      %101 = arith.mulf %100, %100 : vector<32x32xf32>
      %cst_35 = arith.constant dense<0.000000e+00> : vector<32xf32>
      %102 = vector.multi_reduction <add>, %101, %cst_35 [1] : vector<32x32xf32> to vector<32xf32>
      %103 = vector.shape_cast %102 : vector<32xf32> to vector<32x1xf32>
      %cst_36 = arith.constant dense<0.000000e+00> : vector<1xf32>
      %104 = vector.multi_reduction <add>, %103, %cst_36 [0] : vector<32x1xf32> to vector<1xf32>
      %105 = vector.shape_cast %104 : vector<1xf32> to vector<1x1xf32>
      %106 = math.sqrt %105 : vector<1x1xf32>
      %107 = arith.addf %86, %106 : vector<1x1xf32>
      %c0_37 = arith.constant 0 : index
      %c0_38 = arith.constant 0 : index
      %108 = vector.load %arg5[%c0_37, %c0_38] : memref<1x1xf32, #tpu.memory_space<vmem>>, vector<1x1xf32>
      tpu.vector_store %arg5[%c0_37, %c0_38], %107 {strides = array<i32>} : memref<1x1xf32, #tpu.memory_space<vmem>>, vector<1x1xf32>,
    } else {
    }
    %c0 = arith.constant 0 : index
    %c0_1 = arith.constant 0 : index
    %c0_2 = arith.constant 0 : index
    %3 = vector.load %arg2[%c0, %c0_1, %c0_2] : memref<6x32x128xf32, #tpu.memory_space<vmem>>, vector<6x32x128xf32>
    %4 = arith.mulf %3, %3 : vector<6x32x128xf32>
    %cst = arith.constant dense<0.000000e+00> : vector<6x128xf32>
    %5 = vector.multi_reduction <add>, %4, %cst [1] : vector<6x32x128xf32> to vector<6x128xf32>
    %6 = vector.shape_cast %5 : vector<6x128xf32> to vector<6x1x128xf32>
    %7 = math.rsqrt %6 : vector<6x1x128xf32>
    %8 = vector.broadcast %7 : vector<6x1x128xf32> to vector<6x32x128xf32>
    %9 = arith.mulf %3, %8 : vector<6x32x128xf32>
    %10 = vector.extract_strided_slice %9 {offsets = [0, 0, 0], sizes = [1, 32, 128], strides = [1, 1, 1]} : vector<6x32x128xf32> to vector<1x32x128xf32>
    %11 = vector.shape_cast %10 : vector<1x32x128xf32> to vector<32x128xf32>
    %12 = vector.extract_strided_slice %9 {offsets = [1, 0, 0], sizes = [1, 32, 128], strides = [1, 1, 1]} : vector<6x32x128xf32> to vector<1x32x128xf32>
    %13 = vector.shape_cast %12 : vector<1x32x128xf32> to vector<32x128xf32>
    %14 = vector.extract_strided_slice %9 {offsets = [2, 0, 0], sizes = [1, 32, 128], strides = [1, 1, 1]} : vector<6x32x128xf32> to vector<1x32x128xf32>
    %15 = vector.shape_cast %14 : vector<1x32x128xf32> to vector<32x128xf32>
    %16 = vector.extract_strided_slice %9 {offsets = [3, 0, 0], sizes = [1, 32, 128], strides = [1, 1, 1]} : vector<6x32x128xf32> to vector<1x32x128xf32>
    %17 = vector.shape_cast %16 : vector<1x32x128xf32> to vector<32x128xf32>
    %18 = vector.extract_strided_slice %9 {offsets = [4, 0, 0], sizes = [1, 32, 128], strides = [1, 1, 1]} : vector<6x32x128xf32> to vector<1x32x128xf32>
    %19 = vector.shape_cast %18 : vector<1x32x128xf32> to vector<32x128xf32>
    %20 = vector.extract_strided_slice %9 {offsets = [5, 0, 0], sizes = [1, 32, 128], strides = [1, 1, 1]} : vector<6x32x128xf32> to vector<1x32x128xf32>
    %21 = vector.shape_cast %20 : vector<1x32x128xf32> to vector<32x128xf32>
    %22 = arith.addf %11, %15 : vector<32x128xf32>
    %23 = arith.subf %22, %13 : vector<32x128xf32>
    %24 = arith.mulf %23, %23 : vector<32x128xf32>
    %cst_3 = arith.constant dense<0.000000e+00> : vector<128xf32>
    %25 = vector.multi_reduction <add>, %24, %cst_3 [0] : vector<32x128xf32> to vector<128xf32>
    %26 = vector.shape_cast %25 : vector<128xf32> to vector<1x128xf32>
    %27 = math.sqrt %26 : vector<1x128xf32>
    %28 = arith.addf %17, %21 : vector<32x128xf32>
    %29 = arith.subf %28, %19 : vector<32x128xf32>
    %30 = arith.mulf %29, %29 : vector<32x128xf32>
    %cst_4 = arith.constant dense<0.000000e+00> : vector<128xf32>
    %31 = vector.multi_reduction <add>, %30, %cst_4 [0] : vector<32x128xf32> to vector<128xf32>
    %32 = vector.shape_cast %31 : vector<128xf32> to vector<1x128xf32>
    %33 = math.sqrt %32 : vector<1x128xf32>
    %34 = arith.subf %27, %33 : vector<1x128xf32>
    %c0_5 = arith.constant 0 : index
    %c0_6 = arith.constant 0 : index
    %35 = vector.load %arg5[%c0_5, %c0_6] : memref<1x1xf32, #tpu.memory_space<vmem>>, vector<1x1xf32>
    %cst_7 = arith.constant 9.99999974E-5 : f32
    %36 = vector.broadcast %cst_7 : f32 to vector<1x1xf32>
    %37 = arith.mulf %36, %35 : vector<1x1xf32>
    %cst_8 = arith.constant 1.000000e+00 : f32
    %38 = vector.broadcast %cst_8 : f32 to vector<1x1xf32>
    %39 = arith.addf %38, %37 : vector<1x1xf32>
    %40 = vector.broadcast %39 : vector<1x1xf32> to vector<1x128xf32>
    %41 = arith.addf %34, %40 : vector<1x128xf32>
    %c0_9 = arith.constant 0 : index
    %c0_10 = arith.constant 0 : index
    %42 = vector.load %arg4[%c0_9, %c0_10] : memref<1x128xf32, #tpu.memory_space<vmem>>, vector<1x128xf32>
    tpu.vector_store %arg4[%c0_9, %c0_10], %41 {strides = array<i32>} : memref<1x128xf32, #tpu.memory_space<vmem>>, vector<1x128xf32>,
    return
  }
  func.func @transform_0(%arg0: i32, %arg1: memref<3xi32, #tpu.memory_space<smem>>) -> (i32, i32, i32) {
    %c0_i32 = arith.constant 0 : i32
    %c0_i32_0 = arith.constant 0 : i32
    %c0_i32_1 = arith.constant 0 : i32
    return %c0_i32, %c0_i32_0, %arg0 : i32, i32, i32
  }
  func.func @transform_1(%arg0: i32, %arg1: memref<3xi32, #tpu.memory_space<smem>>) -> (i32, i32, i32) {
    %c0_i32 = arith.constant 0 : i32
    %c0_i32_0 = arith.constant 0 : i32
    %c0_i32_1 = arith.constant 0 : i32
    %c0_i32_2 = arith.constant 0 : i32
    return %c0_i32, %c0_i32_0, %c0_i32_1 : i32, i32, i32
  }
  func.func @transform_2(%arg0: i32, %arg1: memref<3xi32, #tpu.memory_space<smem>>) -> (i32, i32) {
    %c0_i32 = arith.constant 0 : i32
    %c0_i32_0 = arith.constant 0 : i32
    return %c0_i32, %arg0 : i32, i32
  }
}

</mosaic_0001>

<llo_original>
// kernel: tpu_custom_call.1
$region0: #{tpu_custom_call.1}
  #allocation0 [shape = 'u32[]', space=smem, size = 0x4, offset = 0x4, fixed_abs, tag = 'smem constant byte address 0x4 - core index']
  #allocation1 [shape = 'u32[144,128]{1,0:T(1,128)}', space=vmem, size = 0x12000, scoped, tag = 'internal scratch']
  #allocation2 [shape = 'f32[1,1]{1,0:T(1,128)}', space=vmem, size = 0x200, scoped, tag = 'scratch operand']
  #allocation3 [shape = 's32[1]{0}', space=sflag, size = 0x4, scoped, tag = 'scoped memory for tpu_custom_call.1']
  #allocation4 [shape = 'u8[512]{0}', space=smem, size = 0x200, scoped, tag = 'prefetched SMEM operand 0']
  %s0 = inlined_call_operand.hbm [shape: s32[3], index: 0, kind: input, shape index: {}]
  %s1 = inlined_call_operand.hbm [shape: f32[6,32,128], index: 1, kind: input, shape index: {}]
  %s2 = inlined_call_operand.hbm [shape: f32[3,8,32], index: 2, kind: input, shape index: {}]
  %s3 = inlined_call_operand.hbm [shape: f32[1,128], index: 3, kind: output, shape index: {}]
  %s4 = sld [smem:[#allocation0]]
  $region30: #{tpu_custom_call.1} parent=0
    _
  %s6 = ssub.s32 1, %s4
  %s7 = scalar_select 0, %s6, %s4
  %9 = dma.hbm_to_smem %s0, 16, [#allocation4], [#allocation3]
  %10 = dma.done [#allocation3], 16
  %11 = sfence
  $region1: #{tpu_custom_call.1} parent=0
    #allocation5 [shape = 'u8[98304]{0}', space=vmem, size = 0x18000, scoped, tag = 'input window, operand 1, single buffered']
    #allocation6 [shape = 's32[1]{0}', space=sflag, size = 0x4, scoped, tag = 'scoped memory for tpu_custom_call.1']
    #allocation7 [shape = 's32[1]{0}', space=sflag, size = 0x4, scoped, tag = 'scoped memory for tpu_custom_call.1']
    #allocation8 [shape = 'u8[12288]{0}', space=vmem, size = 0x3000, scoped, tag = 'input window, operand 2, single buffered']
    #allocation9 [shape = 's32[1]{0}', space=sflag, size = 0x4, scoped, tag = 'scoped memory for tpu_custom_call.1']
    #allocation10 [shape = 'u8[512]{0}', space=vmem, size = 0x400, scoped, tag = 'output window, operand 0, single buffered']
    %12 = vsyncpa [#allocation6], 0
    %13 = vsyncpa [#allocation9], 0
    %14 = vsyncpa [#allocation7], 0
    // Predicated region
    $region2: #{tpu_custom_call.1} parent=1 // pred_check
      _
    $region3: #{tpu_custom_call.1} parent=1 // pred_check_branch
      %16 = sbr.rel (0) target = $region5
    $region4: #{tpu_custom_call.1} parent=1 // pred_region
      %s18 = ssub.s32 3072, 3072
      %19 = vsyncadd [#allocation6], %s18
      %s20 = sshll.u32 [#allocation5], 4
      %s21 = int_to_ptr.vmem [resolvable:$true] %s20
      %26 = dma.hbm_to_vmem [thread:$0]  %s1, 3072, %s21, [#allocation6], 128, 128, 8
    $region5: #{tpu_custom_call.1} parent=1 // pred_fallthru
      _
    // Predicated region
    $region6: #{tpu_custom_call.1} parent=1 // pred_check
      _
    $region7: #{tpu_custom_call.1} parent=1 // pred_check_branch
      %28 = sbr.rel (0) target = $region9
    $region8: #{tpu_custom_call.1} parent=1 // pred_region
      %s30 = ssub.s32 384, 384
      %31 = vsyncadd [#allocation9], %s30
      %s32 = sshll.u32 [#allocation8], 4
      %s33 = int_to_ptr.vmem [resolvable:$true] %s32
      %38 = dma.hbm_to_vmem [thread:$0]  %s2, 384, %s33, [#allocation9], 128, 128, 8
    $region9: #{tpu_custom_call.1} parent=1 // pred_fallthru
      _
    // Predicated region
    $region10: #{tpu_custom_call.1} parent=1 // pred_check
      _
    $region11: #{tpu_custom_call.1} parent=1 // pred_check_branch
      %40 = sbr.rel (0) target = $region13
    $region12: #{tpu_custom_call.1} parent=1 // pred_region
      %41 = dma.done [#allocation6], 3072
    $region13: #{tpu_custom_call.1} parent=1 // pred_fallthru
      _
    // Predicated region
    $region14: #{tpu_custom_call.1} parent=1 // pred_check
      _
    $region15: #{tpu_custom_call.1} parent=1 // pred_check_branch
      %43 = sbr.rel (0) target = $region17
    $region16: #{tpu_custom_call.1} parent=1 // pred_region
      %44 = dma.done [#allocation9], 384
    $region17: #{tpu_custom_call.1} parent=1 // pred_fallthru
      _
    %p45 = scmp.eq.s32.totalorder 0, 0
    // Predicated region
    $region18: #{tpu_custom_call.1} parent=1 // pred_check
      %p46 = pneg %p45
    $region19: #{tpu_custom_call.1} parent=1 // pred_check_branch
      %48 = sbr.rel (%p46) target = $region21
    $region20: #{tpu_custom_call.1} parent=1 // pred_region
      %v49 = vlaneseq
      %v50 = vshrl.u32 %v49, 7
      %v51 = vld [vmem:[#allocation8] sm:$0xff]
      %s52 = sld [smem:[#allocation4]]
      %v53 = vstv %s52
      %vm54 = vcmp.lt.s32.totalorder %v50, %v53
      %v55 = vmul.f32 %v51, %v51
      %vm56 = vcmask 261120
      %v57 = vsel %vm56, %v55, 0.0
      %58 = vadd.xlane.f32.xlu0 %v57
      %v59 = vpop.xlane.xlu0 %58
      %v60 = vrsqrt.pop %v59
      %v61 = vsel %vm54, %v60, 0.0
      %v62 = vmul.f32 %v51, %v61
      %63 = vxpose.xlu0.b32.start [1/16] %v62, 128
      %64 = vxpose.xlu0.b32.cont [2/16] 0.0, 128
      %65 = vxpose.xlu0.b32.cont [3/16] 0.0, 128
      %66 = vxpose.xlu0.b32.cont [4/16] 0.0, 128
      %67 = vxpose.xlu0.b32.cont [5/16] 0.0, 128
      %68 = vxpose.xlu0.b32.cont [6/16] 0.0, 128
      %69 = vxpose.xlu0.b32.cont [7/16] 0.0, 128
      %70 = vxpose.xlu0.b32.cont [8/16] 0.0, 128
      %71 = vxpose.xlu0.b32.cont [9/16] 0.0, 128
      %72 = vxpose.xlu0.b32.cont [10/16] 0.0, 128
      %73 = vxpose.xlu0.b32.cont [11/16] 0.0, 128
      %74 = vxpose.xlu0.b32.cont [12/16] 0.0, 128
      %75 = vxpose.xlu0.b32.cont [13/16] 0.0, 128
      %76 = vxpose.xlu0.b32.cont [14/16] 0.0, 128
      %77 = vxpose.xlu0.b32.cont [15/16] 0.0, 128
      %78 = vxpose.xlu0.b32.end [16/16] 0.0, 128
      %v79 = vpop.trf.xlu0
      %v80 = vpop.trf.xlu0
      %v81 = vpop.trf.xlu0
      %v82 = vpop.trf.xlu0
      %v83 = vpop.trf.xlu0
      %v84 = vpop.trf.xlu0
      %v85 = vpop.trf.xlu0
      %v86 = vpop.trf.xlu0
      %v87 = vpop.trf.xlu0
      %v88 = vpop.trf.xlu0
      %v89 = vpop.trf.xlu0
      %v90 = vpop.trf.xlu0
      %v91 = vpop.trf.xlu0
      %v92 = vpop.trf.xlu0
      %v93 = vpop.trf.xlu0
      %v94 = vpop.trf.xlu0
      %vm95 = vcmask 64512
      %v97 = vsel %vm95, %v79, 0
      %v100 = vsel %vm95, %v80, 0
      %v103 = vsel %vm95, %v81, 0
      %v106 = vsel %vm95, %v82, 0
      %108 = vmatprep.subr.mxu0 0.0
      %109 = vmatpush1.msra.mxu0 0.0
      %110 = vmatprep.subr.mxu0 0.0
      %111 = vmatpush1.msra.mxu0 0.0
      %112 = vmatprep.subr.mxu0 0.0
      %113 = vmatpush1.msra.mxu0 0.0
      %114 = vmatprep.subr.mxu0 0.0
      %115 = vmatpush1.msra.mxu0 0.0
      %116 = vmatprep.subr.mxu0 0.0
      %117 = vmatpush1.msra.mxu0 0.0
      %118 = vmatprep.subr.mxu0 0.0
      %119 = vmatpush1.msra.mxu0 0.0
      %120 = vmatprep.subr.mxu0 0.0
      %121 = vmatpush1.msra.mxu0 0.0
      %122 = vmatprep.subr.mxu0 0.0
      %123 = vmatpush1.msra.mxu0 0.0
      %124 = vmatprep.subr.mxu0 0.0
      %125 = vmatpush1.msra.mxu0 0.0
      %126 = vmatprep.subr.mxu0 0.0
      %127 = vmatpush1.msra.mxu0 0.0
      %128 = vmatprep.subr.mxu0 0.0
      %129 = vmatpush1.msra.mxu0 0.0
      %130 = vmatprep.subr.mxu0 0.0
      %131 = vmatpush1.msra.mxu0 0.0
      %132 = vmatprep.subr.mxu0 0.0
      %133 = vmatpush1.msra.mxu0 0.0
      %134 = vmatprep.subr.mxu0 0.0
      %135 = vmatpush1.msra.mxu0 0.0
      %136 = vmatprep.subr.mxu0 0.0
      %137 = vmatpush1.msra.mxu0 0.0
      %138 = vmatprep.subr.mxu0 0.0
      %139 = vmatpush1.msra.mxu0 %v62
      %140 = vmatprep.subr.mxu0 0.0
      %141 = vmatpush2.msra.mxu0 0.0
      %142 = vmatprep.subr.mxu0 0.0
      %143 = vmatpush2.msra.mxu0 0.0
      %144 = vmatprep.subr.mxu0 0.0
      %145 = vmatpush2.msra.mxu0 0.0
      %146 = vmatprep.subr.mxu0 0.0
      %147 = vmatpush2.msra.mxu0 0.0
      %148 = vmatprep.subr.mxu0 0.0
      %149 = vmatpush2.msra.mxu0 0.0
      %150 = vmatprep.subr.mxu0 0.0
      %151 = vmatpush2.msra.mxu0 0.0
      %152 = vmatprep.subr.mxu0 0.0
      %153 = vmatpush2.msra.mxu0 0.0
      %154 = vmatprep.subr.mxu0 0.0
      %155 = vmatpush2.msra.mxu0 0.0
      %156 = vmatprep.subr.mxu0 0.0
      %157 = vmatpush2.msra.mxu0 0.0
      %158 = vmatprep.subr.mxu0 0.0
      %159 = vmatpush2.msra.mxu0 0.0
      %160 = vmatprep.subr.mxu0 0.0
      %161 = vmatpush2.msra.mxu0 0.0
      %162 = vmatprep.subr.mxu0 0.0
      %163 = vmatpush2.msra.mxu0 0.0
      %164 = vmatprep.subr.mxu0 0.0
      %165 = vmatpush2.msra.mxu0 0.0
      %166 = vmatprep.subr.mxu0 0.0
      %167 = vmatpush2.msra.mxu0 0.0
      %168 = vmatprep.subr.mxu0 0.0
      %169 = vmatpush2.msra.mxu0 0.0
      %170 = vmatprep.subr.mxu0 0.0
      %171 = vmatpush2.msra.mxu0 0.0
      %172 = vmatprep.mubr.f32.mxu0 0.0
      %173 = vmatmul.mubr.f32.gmra.mxu0 %v97
      %v174 = vpop.f32.mrf.mxu0
      %v175 = vadd.f32 0.0, %v174
      %v176 = vpop.f32.mrf.mxu0
      %177 = vmatprep.mubr.f32.mxu0 0.0
      %178 = vmatmul.mubr.f32.gmra.mxu0 %v100
      %v179 = vpop.f32.mrf.mxu0
      %v180 = vadd.f32 0.0, %v179
      %v181 = vpop.f32.mrf.mxu0
      %182 = vmatprep.mubr.f32.mxu0 0.0
      %183 = vmatmul.mubr.f32.gmra.mxu0 %v103
      %v184 = vpop.f32.mrf.mxu0
      %v185 = vadd.f32 0.0, %v184
      %v186 = vpop.f32.mrf.mxu0
      %187 = vmatprep.mubr.f32.mxu0 0.0
      %188 = vmatmul.mubr.f32.gmra.mxu0 %v106
      %v189 = vpop.f32.mrf.mxu0
      %v190 = vadd.f32 0.0, %v189
      %v191 = vpop.f32.mrf.mxu0
      %192 = vdwg.mxu0
      %v193 = vmul.f32 %v175, %v175
      %v194 = vmul.f32 %v180, %v180
      %v195 = vmul.f32 %v185, %v185
      %v196 = vmul.f32 %v190, %v190
      %v197 = vsel %vm56, %v193, 0.0
      %198 = vadd.xlane.f32.xlu0 %v197
      %v199 = vpop.xlane.xlu0 %198
      %v200 = vsel %vm56, %v194, 0.0
      %201 = vadd.xlane.f32.xlu0 %v200
      %v202 = vpop.xlane.xlu0 %201
      %v203 = vsel %vm56, %v195, 0.0
      %204 = vadd.xlane.f32.xlu0 %v203
      %v205 = vpop.xlane.xlu0 %204
      %v206 = vsel %vm56, %v196, 0.0
      %207 = vadd.xlane.f32.xlu0 %v206
      %v208 = vpop.xlane.xlu0 %207
      %v209 = vadd.f32 %v199, %v202
      %v210 = vadd.f32 %v209, %v205
      %v211 = vadd.f32 %v210, %v208
      %v212 = vrot.slane %v211, 4
      %v213 = vadd.f32 %v211, %v212
      %v214 = vrot.slane %v213, 2
      %v215 = vadd.f32 %v213, %v214
      %v216 = vrot.slane %v215, 1
      %v217 = vadd.f32 %v215, %v216
      %v218 = vrsqrt.pop %v217
      %v219 = vmul.f32 %v217, %v218
      %vm220 = vcmp.eq.f32.partialorder %v217, inf
      %v221 = vsel %vm220, %v217, %v219
      %vm222 = vcmp.eq.f32.partialorder %v217, 0.0
      %v223 = vand.u32 %v217, 2147483648
      %v224 = vsel %vm222, %v223, %v221
      %v225 = vadd.f32 %v224, 0.0
      %s226 = scalar_lea.vmem [#allocation8], 8
      %v227 = vld [vmem:[%s226] sm:$0xff]
      %s228 = sld [smem:[#allocation4 + $0x1]]
      %v229 = vstv %s228
      %vm230 = vcmp.lt.s32.totalorder %v50, %v229
      %v231 = vmul.f32 %v227, %v227
      %v232 = vsel %vm56, %v231, 0.0
      %233 = vadd.xlane.f32.xlu0 %v232
      %v234 = vpop.xlane.xlu0 %233
      %v235 = vrsqrt.pop %v234
      %v236 = vsel %vm230, %v235, 0.0
      %v237 = vmul.f32 %v227, %v236
      %238 = vxpose.xlu0.b32.start [1/16] %v237, 128
      %239 = vxpose.xlu0.b32.cont [2/16] 0.0, 128
      %240 = vxpose.xlu0.b32.cont [3/16] 0.0, 128
      %241 = vxpose.xlu0.b32.cont [4/16] 0.0, 128
      %242 = vxpose.xlu0.b32.cont [5/16] 0.0, 128
      %243 = vxpose.xlu0.b32.cont [6/16] 0.0, 128
      %244 = vxpose.xlu0.b32.cont [7/16] 0.0, 128
      %245 = vxpose.xlu0.b32.cont [8/16] 0.0, 128
      %246 = vxpose.xlu0.b32.cont [9/16] 0.0, 128
      %247 = vxpose.xlu0.b32.cont [10/16] 0.0, 128
      %248 = vxpose.xlu0.b32.cont [11/16] 0.0, 128
      %249 = vxpose.xlu0.b32.cont [12/16] 0.0, 128
      %250 = vxpose.xlu0.b32.cont [13/16] 0.0, 128
      %251 = vxpose.xlu0.b32.cont [14/16] 0.0, 128
      %252 = vxpose.xlu0.b32.cont [15/16] 0.0, 128
      %253 = vxpose.xlu0.b32.end [16/16] 0.0, 128
      %v254 = vpop.trf.xlu0
      %v255 = vpop.trf.xlu0
      %v256 = vpop.trf.xlu0
      %v257 = vpop.trf.xlu0
      %v258 = vpop.trf.xlu0
      %v259 = vpop.trf.xlu0
      %v260 = vpop.trf.xlu0
      %v261 = vpop.trf.xlu0
      %v262 = vpop.trf.xlu0
      %v263 = vpop.trf.xlu0
      %v264 = vpop.trf.xlu0
      %v265 = vpop.trf.xlu0
      %v266 = vpop.trf.xlu0
      %v267 = vpop.trf.xlu0
      %v268 = vpop.trf.xlu0
      %v269 = vpop.trf.xlu0
      %v271 = vsel %vm95, %v254, 0
      %v274 = vsel %vm95, %v255, 0
      %v277 = vsel %vm95, %v256, 0
      %v280 = vsel %vm95, %v257, 0
      %282 = vmatprep.subr.mxu0 0.0
      %283 = vmatpush1.msra.mxu0 0.0
      %284 = vmatprep.subr.mxu0 0.0
      %285 = vmatpush1.msra.mxu0 0.0
      %286 = vmatprep.subr.mxu0 0.0
      %287 = vmatpush1.msra.mxu0 0.0
      %288 = vmatprep.subr.mxu0 0.0
      %289 = vmatpush1.msra.mxu0 0.0
      %290 = vmatprep.subr.mxu0 0.0
      %291 = vmatpush1.msra.mxu0 0.0
      %292 = vmatprep.subr.mxu0 0.0
      %293 = vmatpush1.msra.mxu0 0.0
      %294 = vmatprep.subr.mxu0 0.0
      %295 = vmatpush1.msra.mxu0 0.0
      %296 = vmatprep.subr.mxu0 0.0
      %297 = vmatpush1.msra.mxu0 0.0
      %298 = vmatprep.subr.mxu0 0.0
      %299 = vmatpush1.msra.mxu0 0.0
      %300 = vmatprep.subr.mxu0 0.0
      %301 = vmatpush1.msra.mxu0 0.0
      %302 = vmatprep.subr.mxu0 0.0
      %303 = vmatpush1.msra.mxu0 0.0
      %304 = vmatprep.subr.mxu0 0.0
      %305 = vmatpush1.msra.mxu0 0.0
      %306 = vmatprep.subr.mxu0 0.0
      %307 = vmatpush1.msra.mxu0 0.0
      %308 = vmatprep.subr.mxu0 0.0
      %309 = vmatpush1.msra.mxu0 0.0
      %310 = vmatprep.subr.mxu0 0.0
      %311 = vmatpush1.msra.mxu0 0.0
      %312 = vmatprep.subr.mxu0 0.0
      %313 = vmatpush1.msra.mxu0 %v237
      %314 = vmatprep.subr.mxu0 0.0
      %315 = vmatpush2.msra.mxu0 0.0
      %316 = vmatprep.subr.mxu0 0.0
      %317 = vmatpush2.msra.mxu0 0.0
      %318 = vmatprep.subr.mxu0 0.0
      %319 = vmatpush2.msra.mxu0 0.0
      %320 = vmatprep.subr.mxu0 0.0
      %321 = vmatpush2.msra.mxu0 0.0
      %322 = vmatprep.subr.mxu0 0.0
      %323 = vmatpush2.msra.mxu0 0.0
      %324 = vmatprep.subr.mxu0 0.0
      %325 = vmatpush2.msra.mxu0 0.0
      %326 = vmatprep.subr.mxu0 0.0
      %327 = vmatpush2.msra.mxu0 0.0
      %328 = vmatprep.subr.mxu0 0.0
      %329 = vmatpush2.msra.mxu0 0.0
      %330 = vmatprep.subr.mxu0 0.0
      %331 = vmatpush2.msra.mxu0 0.0
      %332 = vmatprep.subr.mxu0 0.0
      %333 = vmatpush2.msra.mxu0 0.0
      %334 = vmatprep.subr.mxu0 0.0
      %335 = vmatpush2.msra.mxu0 0.0
      %336 = vmatprep.subr.mxu0 0.0
      %337 = vmatpush2.msra.mxu0 0.0
      %338 = vmatprep.subr.mxu0 0.0
      %339 = vmatpush2.msra.mxu0 0.0
      %340 = vmatprep.subr.mxu0 0.0
      %341 = vmatpush2.msra.mxu0 0.0
      %342 = vmatprep.subr.mxu0 0.0
      %343 = vmatpush2.msra.mxu0 0.0
      %344 = vmatprep.subr.mxu0 0.0
      %345 = vmatpush2.msra.mxu0 0.0
      %346 = vmatprep.mubr.f32.mxu0 0.0
      %347 = vmatmul.mubr.f32.gmra.mxu0 %v271
      %v348 = vpop.f32.mrf.mxu0
      %v349 = vadd.f32 0.0, %v348
      %v350 = vpop.f32.mrf.mxu0
      %351 = vmatprep.mubr.f32.mxu0 0.0
      %352 = vmatmul.mubr.f32.gmra.mxu0 %v274
      %v353 = vpop.f32.mrf.mxu0
      %v354 = vadd.f32 0.0, %v353
      %v355 = vpop.f32.mrf.mxu0
      %356 = vmatprep.mubr.f32.mxu0 0.0
      %357 = vmatmul.mubr.f32.gmra.mxu0 %v277
      %v358 = vpop.f32.mrf.mxu0
      %v359 = vadd.f32 0.0, %v358
      %v360 = vpop.f32.mrf.mxu0
      %361 = vmatprep.mubr.f32.mxu0 0.0
      %362 = vmatmul.mubr.f32.gmra.mxu0 %v280
      %v363 = vpop.f32.mrf.mxu0
      %v364 = vadd.f32 0.0, %v363
      %v365 = vpop.f32.mrf.mxu0
      %366 = vdwg.mxu0
      %v367 = vmul.f32 %v349, %v349
      %v368 = vmul.f32 %v354, %v354
      %v369 = vmul.f32 %v359, %v359
      %v370 = vmul.f32 %v364, %v364
      %v371 = vsel %vm56, %v367, 0.0
      %372 = vadd.xlane.f32.xlu0 %v371
      %v373 = vpop.xlane.xlu0 %372
      %v374 = vsel %vm56, %v368, 0.0
      %375 = vadd.xlane.f32.xlu0 %v374
      %v376 = vpop.xlane.xlu0 %375
      %v377 = vsel %vm56, %v369, 0.0
      %378 = vadd.xlane.f32.xlu0 %v377
      %v379 = vpop.xlane.xlu0 %378
      %v380 = vsel %vm56, %v370, 0.0
      %381 = vadd.xlane.f32.xlu0 %v380
      %v382 = vpop.xlane.xlu0 %381
      %v383 = vadd.f32 %v373, %v376
      %v384 = vadd.f32 %v383, %v379
      %v385 = vadd.f32 %v384, %v382
      %v386 = vrot.slane %v385, 4
      %v387 = vadd.f32 %v385, %v386
      %v388 = vrot.slane %v387, 2
      %v389 = vadd.f32 %v387, %v388
      %v390 = vrot.slane %v389, 1
      %v391 = vadd.f32 %v389, %v390
      %v392 = vrsqrt.pop %v391
      %v393 = vmul.f32 %v391, %v392
      %vm394 = vcmp.eq.f32.partialorder %v391, inf
      %v395 = vsel %vm394, %v391, %v393
      %vm396 = vcmp.eq.f32.partialorder %v391, 0.0
      %v397 = vand.u32 %v391, 2147483648
      %v398 = vsel %vm396, %v397, %v395
      %v399 = vadd.f32 %v225, %v398
      %s400 = scalar_lea.vmem [#allocation8], 16
      %v401 = vld [vmem:[%s400] sm:$0xff]
      %s402 = sld [smem:[#allocation4 + $0x2]]
      %v403 = vstv %s402
      %vm404 = vcmp.lt.s32.totalorder %v50, %v403
      %v405 = vmul.f32 %v401, %v401
      %v406 = vsel %vm56, %v405, 0.0
      %407 = vadd.xlane.f32.xlu0 %v406
      %v408 = vpop.xlane.xlu0 %407
      %v409 = vrsqrt.pop %v408
      %v410 = vsel %vm404, %v409, 0.0
      %v411 = vmul.f32 %v401, %v410
      %412 = vxpose.xlu0.b32.start [1/16] %v411, 128
      %413 = vxpose.xlu0.b32.cont [2/16] 0.0, 128
      %414 = vxpose.xlu0.b32.cont [3/16] 0.0, 128
      %415 = vxpose.xlu0.b32.cont [4/16] 0.0, 128
      %416 = vxpose.xlu0.b32.cont [5/16] 0.0, 128
      %417 = vxpose.xlu0.b32.cont [6/16] 0.0, 128
      %418 = vxpose.xlu0.b32.cont [7/16] 0.0, 128
      %419 = vxpose.xlu0.b32.cont [8/16] 0.0, 128
      %420 = vxpose.xlu0.b32.cont [9/16] 0.0, 128
      %421 = vxpose.xlu0.b32.cont [10/16] 0.0, 128
      %422 = vxpose.xlu0.b32.cont [11/16] 0.0, 128
      %423 = vxpose.xlu0.b32.cont [12/16] 0.0, 128
      %424 = vxpose.xlu0.b32.cont [13/16] 0.0, 128
      %425 = vxpose.xlu0.b32.cont [14/16] 0.0, 128
      %426 = vxpose.xlu0.b32.cont [15/16] 0.0, 128
      %427 = vxpose.xlu0.b32.end [16/16] 0.0, 128
      %v428 = vpop.trf.xlu0
      %v429 = vpop.trf.xlu0
      %v430 = vpop.trf.xlu0
      %v431 = vpop.trf.xlu0
      %v432 = vpop.trf.xlu0
      %v433 = vpop.trf.xlu0
      %v434 = vpop.trf.xlu0
      %v435 = vpop.trf.xlu0
      %v436 = vpop.trf.xlu0
      %v437 = vpop.trf.xlu0
      %v438 = vpop.trf.xlu0
      %v439 = vpop.trf.xlu0
      %v440 = vpop.trf.xlu0
      %v441 = vpop.trf.xlu0
      %v442 = vpop.trf.xlu0
      %v443 = vpop.trf.xlu0
      %v445 = vsel %vm95, %v428, 0
      %v448 = vsel %vm95, %v429, 0
      %v451 = vsel %vm95, %v430, 0
      %v454 = vsel %vm95, %v431, 0
      %456 = vmatprep.subr.mxu0 0.0
      %457 = vmatpush1.msra.mxu0 0.0
      %458 = vmatprep.subr.mxu0 0.0
      %459 = vmatpush1.msra.mxu0 0.0
      %460 = vmatprep.subr.mxu0 0.0
      %461 = vmatpush1.msra.mxu0 0.0
      %462 = vmatprep.subr.mxu0 0.0
      %463 = vmatpush1.msra.mxu0 0.0
      %464 = vmatprep.subr.mxu0 0.0
      %465 = vmatpush1.msra.mxu0 0.0
      %466 = vmatprep.subr.mxu0 0.0
      %467 = vmatpush1.msra.mxu0 0.0
      %468 = vmatprep.subr.mxu0 0.0
      %469 = vmatpush1.msra.mxu0 0.0
      %470 = vmatprep.subr.mxu0 0.0
      %471 = vmatpush1.msra.mxu0 0.0
      %472 = vmatprep.subr.mxu0 0.0
      %473 = vmatpush1.msra.mxu0 0.0
      %474 = vmatprep.subr.mxu0 0.0
      %475 = vmatpush1.msra.mxu0 0.0
      %476 = vmatprep.subr.mxu0 0.0
      %477 = vmatpush1.msra.mxu0 0.0
      %478 = vmatprep.subr.mxu0 0.0
      %479 = vmatpush1.msra.mxu0 0.0
      %480 = vmatprep.subr.mxu0 0.0
      %481 = vmatpush1.msra.mxu0 0.0
      %482 = vmatprep.subr.mxu0 0.0
      %483 = vmatpush1.msra.mxu0 0.0
      %484 = vmatprep.subr.mxu0 0.0
      %485 = vmatpush1.msra.mxu0 0.0
      %486 = vmatprep.subr.mxu0 0.0
      %487 = vmatpush1.msra.mxu0 %v411
      %488 = vmatprep.subr.mxu0 0.0
      %489 = vmatpush2.msra.mxu0 0.0
      %490 = vmatprep.subr.mxu0 0.0
      %491 = vmatpush2.msra.mxu0 0.0
      %492 = vmatprep.subr.mxu0 0.0
      %493 = vmatpush2.msra.mxu0 0.0
      %494 = vmatprep.subr.mxu0 0.0
      %495 = vmatpush2.msra.mxu0 0.0
      %496 = vmatprep.subr.mxu0 0.0
      %497 = vmatpush2.msra.mxu0 0.0
      %498 = vmatprep.subr.mxu0 0.0
      %499 = vmatpush2.msra.mxu0 0.0
      %500 = vmatprep.subr.mxu0 0.0
      %501 = vmatpush2.msra.mxu0 0.0
      %502 = vmatprep.subr.mxu0 0.0
      %503 = vmatpush2.msra.mxu0 0.0
      %504 = vmatprep.subr.mxu0 0.0
      %505 = vmatpush2.msra.mxu0 0.0
      %506 = vmatprep.subr.mxu0 0.0
      %507 = vmatpush2.msra.mxu0 0.0
      %508 = vmatprep.subr.mxu0 0.0
      %509 = vmatpush2.msra.mxu0 0.0
      %510 = vmatprep.subr.mxu0 0.0
      %511 = vmatpush2.msra.mxu0 0.0
      %512 = vmatprep.subr.mxu0 0.0
      %513 = vmatpush2.msra.mxu0 0.0
      %514 = vmatprep.subr.mxu0 0.0
      %515 = vmatpush2.msra.mxu0 0.0
      %516 = vmatprep.subr.mxu0 0.0
      %517 = vmatpush2.msra.mxu0 0.0
      %518 = vmatprep.subr.mxu0 0.0
      %519 = vmatpush2.msra.mxu0 0.0
      %520 = vmatprep.mubr.f32.mxu0 0.0
      %521 = vmatmul.mubr.f32.gmra.mxu0 %v445
      %v522 = vpop.f32.mrf.mxu0
      %v523 = vadd.f32 0.0, %v522
      %v524 = vpop.f32.mrf.mxu0
      %525 = vmatprep.mubr.f32.mxu0 0.0
      %526 = vmatmul.mubr.f32.gmra.mxu0 %v448
      %v527 = vpop.f32.mrf.mxu0
      %v528 = vadd.f32 0.0, %v527
      %v529 = vpop.f32.mrf.mxu0
      %530 = vmatprep.mubr.f32.mxu0 0.0
      %531 = vmatmul.mubr.f32.gmra.mxu0 %v451
      %v532 = vpop.f32.mrf.mxu0
      %v533 = vadd.f32 0.0, %v532
      %v534 = vpop.f32.mrf.mxu0
      %535 = vmatprep.mubr.f32.mxu0 0.0
      %536 = vmatmul.mubr.f32.gmra.mxu0 %v454
      %v537 = vpop.f32.mrf.mxu0
      %v538 = vadd.f32 0.0, %v537
      %v539 = vpop.f32.mrf.mxu0
      %540 = vdwg.mxu0
      %v541 = vmul.f32 %v523, %v523
      %v542 = vmul.f32 %v528, %v528
      %v543 = vmul.f32 %v533, %v533
      %v544 = vmul.f32 %v538, %v538
      %v545 = vsel %vm56, %v541, 0.0
      %546 = vadd.xlane.f32.xlu0 %v545
      %v547 = vpop.xlane.xlu0 %546
      %v548 = vsel %vm56, %v542, 0.0
      %549 = vadd.xlane.f32.xlu0 %v548
      %v550 = vpop.xlane.xlu0 %549
      %v551 = vsel %vm56, %v543, 0.0
      %552 = vadd.xlane.f32.xlu0 %v551
      %v553 = vpop.xlane.xlu0 %552
      %v554 = vsel %vm56, %v544, 0.0
      %555 = vadd.xlane.f32.xlu0 %v554
      %v556 = vpop.xlane.xlu0 %555
      %v557 = vadd.f32 %v547, %v550
      %v558 = vadd.f32 %v557, %v553
      %v559 = vadd.f32 %v558, %v556
      %v560 = vrot.slane %v559, 4
      %v561 = vadd.f32 %v559, %v560
      %v562 = vrot.slane %v561, 2
      %v563 = vadd.f32 %v561, %v562
      %v564 = vrot.slane %v563, 1
      %v565 = vadd.f32 %v563, %v564
      %v566 = vrsqrt.pop %v565
      %v567 = vmul.f32 %v565, %v566
      %vm568 = vcmp.eq.f32.partialorder %v565, inf
      %v569 = vsel %vm568, %v565, %v567
      %vm570 = vcmp.eq.f32.partialorder %v565, 0.0
      %v571 = vand.u32 %v565, 2147483648
      %v572 = vsel %vm570, %v571, %v569
      %v573 = vadd.f32 %v399, %v572
      %vm574 = vcmask 0
      %575 = vst.msk [vmem:[#allocation2] sm:$0x1] %vm574, %v573
    $region21: #{tpu_custom_call.1} parent=1 // pred_fallthru
      _
    %v576 = vld [vmem:[#allocation5] sm:$0xff]
    %v577 = vld [vmem:[#allocation5 + $0x8] sm:$0xff]
    %v578 = vld [vmem:[#allocation5 + $0x10] sm:$0xff]
    %v579 = vld [vmem:[#allocation5 + $0x18] sm:$0xff]
    %v580 = vld [vmem:[#allocation5 + $0x20] sm:$0xff]
    %v581 = vld [vmem:[#allocation5 + $0x28] sm:$0xff]
    %v582 = vld [vmem:[#allocation5 + $0x30] sm:$0xff]
    %v583 = vld [vmem:[#allocation5 + $0x38] sm:$0xff]
    %v584 = vld [vmem:[#allocation5 + $0x40] sm:$0xff]
    %v585 = vld [vmem:[#allocation5 + $0x48] sm:$0xff]
    %v586 = vld [vmem:[#allocation5 + $0x50] sm:$0xff]
    %v587 = vld [vmem:[#allocation5 + $0x58] sm:$0xff]
    %v588 = vld [vmem:[#allocation5 + $0x60] sm:$0xff]
    %v589 = vld [vmem:[#allocation5 + $0x68] sm:$0xff]
    %v590 = vld [vmem:[#allocation5 + $0x70] sm:$0xff]
    %v591 = vld [vmem:[#allocation5 + $0x78] sm:$0xff]
    %v592 = vld [vmem:[#allocation5 + $0x80] sm:$0xff]
    %v593 = vld [vmem:[#allocation5 + $0x88] sm:$0xff]
    %v594 = vld [vmem:[#allocation5 + $0x90] sm:$0xff]
    %v595 = vld [vmem:[#allocation5 + $0x98] sm:$0xff]
    %v596 = vld [vmem:[#allocation5 + $0xa0] sm:$0xff]
    %v597 = vld [vmem:[#allocation5 + $0xa8] sm:$0xff]
    %v598 = vld [vmem:[#allocation5 + $0xb0] sm:$0xff]
    %v599 = vld [vmem:[#allocation5 + $0xb8] sm:$0xff]
    %v600 = vmul.f32 %v576, %v576
    %v601 = vmul.f32 %v577, %v577
    %v602 = vmul.f32 %v578, %v578
    %v603 = vmul.f32 %v579, %v579
    %v604 = vmul.f32 %v580, %v580
    %v605 = vmul.f32 %v581, %v581
    %v606 = vmul.f32 %v582, %v582
    %v607 = vmul.f32 %v583, %v583
    %v608 = vmul.f32 %v584, %v584
    %v609 = vmul.f32 %v585, %v585
    %v610 = vmul.f32 %v586, %v586
    %v611 = vmul.f32 %v587, %v587
    %v612 = vmul.f32 %v588, %v588
    %v613 = vmul.f32 %v589, %v589
    %v614 = vmul.f32 %v590, %v590
    %v615 = vmul.f32 %v591, %v591
    %v616 = vmul.f32 %v592, %v592
    %v617 = vmul.f32 %v593, %v593
    %v618 = vmul.f32 %v594, %v594
    %v619 = vmul.f32 %v595, %v595
    %v620 = vmul.f32 %v596, %v596
    %v621 = vmul.f32 %v597, %v597
    %v622 = vmul.f32 %v598, %v598
    %v623 = vmul.f32 %v599, %v599
    %v624 = vadd.f32 %v600, %v601
    %v625 = vadd.f32 %v624, %v602
    %v626 = vadd.f32 %v625, %v603
    %v627 = vrot.slane %v626, 4
    %v628 = vadd.f32 %v626, %v627
    %v629 = vrot.slane %v628, 2
    %v630 = vadd.f32 %v628, %v629
    %v631 = vrot.slane %v630, 1
    %v632 = vadd.f32 %v630, %v631
    %v633 = vadd.f32 %v604, %v605
    %v634 = vadd.f32 %v633, %v606
    %v635 = vadd.f32 %v634, %v607
    %v636 = vrot.slane %v635, 4
    %v637 = vadd.f32 %v635, %v636
    %v638 = vrot.slane %v637, 2
    %v639 = vadd.f32 %v637, %v638
    %v640 = vrot.slane %v639, 1
    %v641 = vadd.f32 %v639, %v640
    %v642 = vadd.f32 %v608, %v609
    %v643 = vadd.f32 %v642, %v610
    %v644 = vadd.f32 %v643, %v611
    %v645 = vrot.slane %v644, 4
    %v646 = vadd.f32 %v644, %v645
    %v647 = vrot.slane %v646, 2
    %v648 = vadd.f32 %v646, %v647
    %v649 = vrot.slane %v648, 1
    %v650 = vadd.f32 %v648, %v649
    %v651 = vadd.f32 %v612, %v613
    %v652 = vadd.f32 %v651, %v614
    %v653 = vadd.f32 %v652, %v615
    %v654 = vrot.slane %v653, 4
    %v655 = vadd.f32 %v653, %v654
    %v656 = vrot.slane %v655, 2
    %v657 = vadd.f32 %v655, %v656
    %v658 = vrot.slane %v657, 1
    %v659 = vadd.f32 %v657, %v658
    %v660 = vadd.f32 %v616, %v617
    %v661 = vadd.f32 %v660, %v618
    %v662 = vadd.f32 %v661, %v619
    %v663 = vrot.slane %v662, 4
    %v664 = vadd.f32 %v662, %v663
    %v665 = vrot.slane %v664, 2
    %v666 = vadd.f32 %v664, %v665
    %v667 = vrot.slane %v666, 1
    %v668 = vadd.f32 %v666, %v667
    %v669 = vadd.f32 %v620, %v621
    %v670 = vadd.f32 %v669, %v622
    %v671 = vadd.f32 %v670, %v623
    %v672 = vrot.slane %v671, 4
    %v673 = vadd.f32 %v671, %v672
    %v674 = vrot.slane %v673, 2
    %v675 = vadd.f32 %v673, %v674
    %v676 = vrot.slane %v675, 1
    %v677 = vadd.f32 %v675, %v676
    %v678 = vrsqrt.pop %v632
    %v679 = vrsqrt.pop %v641
    %v680 = vrsqrt.pop %v650
    %v681 = vrsqrt.pop %v659
    %v682 = vrsqrt.pop %v668
    %v683 = vrsqrt.pop %v677
    %v684 = vmul.f32 %v576, %v678
    %v685 = vmul.f32 %v577, %v678
    %v686 = vmul.f32 %v578, %v678
    %v687 = vmul.f32 %v579, %v678
    %v688 = vmul.f32 %v580, %v679
    %v689 = vmul.f32 %v581, %v679
    %v690 = vmul.f32 %v582, %v679
    %v691 = vmul.f32 %v583, %v679
    %v692 = vmul.f32 %v584, %v680
    %v693 = vmul.f32 %v585, %v680
    %v694 = vmul.f32 %v586, %v680
    %v695 = vmul.f32 %v587, %v680
    %v696 = vmul.f32 %v588, %v681
    %v697 = vmul.f32 %v589, %v681
    %v698 = vmul.f32 %v590, %v681
    %v699 = vmul.f32 %v591, %v681
    %v700 = vmul.f32 %v592, %v682
    %v701 = vmul.f32 %v593, %v682
    %v702 = vmul.f32 %v594, %v682
    %v703 = vmul.f32 %v595, %v682
    %v704 = vmul.f32 %v596, %v683
    %v705 = vmul.f32 %v597, %v683
    %v706 = vmul.f32 %v598, %v683
    %v707 = vmul.f32 %v599, %v683
    %v708 = vadd.f32 %v684, %v692
    %v709 = vadd.f32 %v685, %v693
    %v710 = vadd.f32 %v686, %v694
    %v711 = vadd.f32 %v687, %v695
    %v712 = vsub.f32 %v708, %v688
    %v713 = vsub.f32 %v709, %v689
    %v714 = vsub.f32 %v710, %v690
    %v715 = vsub.f32 %v711, %v691
    %v716 = vmul.f32 %v712, %v712
    %v717 = vmul.f32 %v713, %v713
    %v718 = vmul.f32 %v714, %v714
    %v719 = vmul.f32 %v715, %v715
    %v720 = vadd.f32 %v716, %v717
    %v721 = vadd.f32 %v720, %v718
    %v722 = vadd.f32 %v721, %v719
    %v723 = vrot.slane %v722, 4
    %v724 = vadd.f32 %v722, %v723
    %v725 = vrot.slane %v724, 2
    %v726 = vadd.f32 %v724, %v725
    %v727 = vrot.slane %v726, 1
    %v728 = vadd.f32 %v726, %v727
    %v729 = vrsqrt.pop %v728
    %v730 = vmul.f32 %v728, %v729
    %vm731 = vcmp.eq.f32.partialorder %v728, inf
    %v732 = vsel %vm731, %v728, %v730
    %vm733 = vcmp.eq.f32.partialorder %v728, 0.0
    %v734 = vand.u32 %v728, 2147483648
    %v735 = vsel %vm733, %v734, %v732
    %v736 = vadd.f32 %v696, %v704
    %v737 = vadd.f32 %v697, %v705
    %v738 = vadd.f32 %v698, %v706
    %v739 = vadd.f32 %v699, %v707
    %v740 = vsub.f32 %v736, %v700
    %v741 = vsub.f32 %v737, %v701
    %v742 = vsub.f32 %v738, %v702
    %v743 = vsub.f32 %v739, %v703
    %v744 = vmul.f32 %v740, %v740
    %v745 = vmul.f32 %v741, %v741
    %v746 = vmul.f32 %v742, %v742
    %v747 = vmul.f32 %v743, %v743
    %v748 = vadd.f32 %v744, %v745
    %v749 = vadd.f32 %v748, %v746
    %v750 = vadd.f32 %v749, %v747
    %v751 = vrot.slane %v750, 4
    %v752 = vadd.f32 %v750, %v751
    %v753 = vrot.slane %v752, 2
    %v754 = vadd.f32 %v752, %v753
    %v755 = vrot.slane %v754, 1
    %v756 = vadd.f32 %v754, %v755
    %v757 = vrsqrt.pop %v756
    %v758 = vmul.f32 %v756, %v757
    %vm759 = vcmp.eq.f32.partialorder %v756, inf
    %v760 = vsel %vm759, %v756, %v758
    %vm761 = vcmp.eq.f32.partialorder %v756, 0.0
    %v762 = vand.u32 %v756, 2147483648
    %v763 = vsel %vm761, %v762, %v760
    %v764 = vsub.f32 %v735, %v763
    %v765 = vld [vmem:[#allocation2] sm:$0x1]
    %v766 = vmul.f32 %v765, 0.0001
    %v767 = vadd.f32 %v766, 1.0
    %769 = vset.pattern.permute.xlu0 0
    %770 = vperm.xlu0 %769, %v767
    %v771 = vpop.permute.xlu0 %770
    %v773 = vlaneseq
    %v774 = vshrl.u32 %v773, 7
    %v775 = vsub.s32 0, %v774
    %v776 = vrot.slane %v771, %v775
    %v777 = vadd.f32 %v764, %v776
    %778 = vst [vmem:[#allocation10] sm:$0x1] %v777
    // Predicated region
    $region22: #{tpu_custom_call.1} parent=1 // pred_check
      _
    $region23: #{tpu_custom_call.1} parent=1 // pred_check_branch
      %780 = sbr.rel (0) target = $region25
    $region24: #{tpu_custom_call.1} parent=1 // pred_region
      %s782 = ssub.s32 16, 16
      %783 = vsyncadd [#allocation7], %s782
      %s785 = sshll.u32 [#allocation10], 4
      %s786 = int_to_ptr.vmem [resolvable:$true] %s785
      %788 = dma.vmem_to_hbm [thread:$0]  %s786, 16, %s3, [#allocation7]
    $region25: #{tpu_custom_call.1} parent=1 // pred_fallthru
      _
    // Predicated region
    $region26: #{tpu_custom_call.1} parent=1 // pred_check
      _
    $region27: #{tpu_custom_call.1} parent=1 // pred_check_branch
      %790 = sbr.rel (0) target = $region29
    $region28: #{tpu_custom_call.1} parent=1 // pred_region
      %791 = dma.done [#allocation7], 16
    $region29: #{tpu_custom_call.1} parent=1 // pred_fallthru
      _
    %792 = vsyncpa [#allocation6], 1
    %793 = vsyncpa [#allocation9], 1
    %794 = vsyncpa [#allocation7], 1

</llo_original>
